<compile_context>
chip_gen: v5e
topology: v5e:2x2
jax: 0.10.0
libtpu: 0.0.40
codegen_flags: <defaults>
</compile_context>

<pallas_src>
import functools

import jax
import jax.numpy as jnp
import numpy as np
from jax import lax
from jax.experimental import pallas as pl
from jax.experimental.pallas import tpu as pltpu

# configer.get('gan', 'loss_weight') -- deterministic synthetic config value.
LOSS_WEIGHT = 1.0

_LANES = 128
_SUBLANES = 8
_TILE_ELEMS = _SUBLANES * _LANES     # 1024 elems = one (8,128) f32 vreg tile
_MAX_TILES_PER_BLOCK = 512           # 2 MiB f32 per block per input
_CHUNK_TILES = 16                    # in-kernel accumulation chunk (64 KiB f32)
_MIN_TILES_FOR_SPLIT = 64            # sections >=256 KiB get >=2 blocks (v7x megacore)
_SENTINEL = 110.0                    # softplus(-110) == 0.0 exactly in f32 (no NaN/Inf)


def _cdiv(a, b):
    return -(-a // b)


def _chunk_loss(x, negate):
    """Stable BCE-with-logits, summed over the chunk's tile axis -> (8,128) f32."""
    x = x.astype(jnp.float32)                      # upcast right after load (bf16 path)
    z = -x if negate else x                        # target 1 -> softplus(-x); target 0 -> softplus(x)
    l = jnp.maximum(z, 0.0) + jnp.log1p(jnp.exp(-jnp.abs(z)))
    return jnp.sum(l, axis=0)                      # VPU adds over the leading (untiled) axis


def _block_loss_sum(x_ref, negate):
    """Sum of BCE losses over one (tpb, 8, 128) block -> (1, 8, 128) f32."""
    tpb = x_ref.shape[0]
    chunk = min(_CHUNK_TILES, tpb)
    n_full = tpb // chunk
    rem = tpb - n_full * chunk

    acc = _chunk_loss(x_ref[pl.ds(0, chunk), :, :], negate)
    if n_full > 1:
        def body(c, a):
            off = pl.multiple_of(c * chunk, chunk)
            return a + _chunk_loss(x_ref[pl.ds(off, chunk), :, :], negate)
        acc = lax.fori_loop(1, n_full, body, acc)
    if rem:
        acc = acc + _chunk_loss(x_ref[pl.ds(n_full * chunk, rem), :, :], negate)
    return acc[None, :, :]


def _gan_loss_kernel(x1_ref, x2_ref, x3_ref, o_ref, *, b1, b2):
    """One grid step: compute the partial BCE sum of whichever section owns this block.

    x1_ref : (tpb1, 8, 128) block of `real`       (target 1), blocks [0, b1)
    x2_ref : (tpb2, 8, 128) block of `real_pred`  (target 1), blocks [b1, b1+b2)
    x3_ref : (tpb3, 8, 128) block of `fake_pred`  (target 0), blocks [b1+b2, ...)
    o_ref  : (1, 8, 128) per-block partial sum (own slot -> grid axis stays "parallel").
    """
    i = pl.program_id(0)

    @pl.when(i < b1)
    def _():
        o_ref[...] = _block_loss_sum(x1_ref, negate=True)

    @pl.when((i >= b1) & (i < b1 + b2))
    def _():
        o_ref[...] = _block_loss_sum(x2_ref, negate=True)

    @pl.when(i >= b1 + b2)
    def _():
        o_ref[...] = _block_loss_sum(x3_ref, negate=False)


def _section_layout(n_elems):
    """Pick (num_blocks, tiles_per_block) for one logit tensor."""
    n_tiles = _cdiv(n_elems, _TILE_ELEMS)
    n_blocks = _cdiv(n_tiles, _MAX_TILES_PER_BLOCK)
    if n_tiles >= _MIN_TILES_FOR_SPLIT:
        n_blocks = max(n_blocks, 2)                # keep both v7x TensorCores fed
    tiles_per_block = _cdiv(n_tiles, n_blocks)
    return n_blocks, tiles_per_block


def _prep_section(x, sentinel, n_blocks, tiles_per_block):
    """Flatten, sentinel-pad to the block multiple and reshape lane-dense (tiles,8,128)."""
    dtype = jnp.bfloat16 if x.dtype == jnp.bfloat16 else jnp.float32
    flat = x.reshape(-1).astype(dtype)
    padded = n_blocks * tiles_per_block * _TILE_ELEMS
    if padded != flat.shape[0]:
        flat = jnp.pad(flat, (0, padded - flat.shape[0]), constant_values=sentinel)
    return flat.reshape(n_blocks * tiles_per_block, _SUBLANES, _LANES)


def gan_loss(real, fake_pred, real_pred, loss_weight=LOSS_WEIGHT):
    n1 = int(np.prod(real.shape))        # target 1
    n2 = int(np.prod(real_pred.shape))   # target 1
    n3 = int(np.prod(fake_pred.shape))   # target 0
    n_total = n1 + n2 + n3

    (b1, tpb1) = _section_layout(n1)
    (b2, tpb2) = _section_layout(n2)
    (b3, tpb3) = _section_layout(n3)
    num_blocks = b1 + b2 + b3

    # Zero-loss sentinels: +S for target-1 sections (softplus(-S)=0), -S for target-0.
    x1 = _prep_section(real,      +_SENTINEL, b1, tpb1)
    x2 = _prep_section(real_pred, +_SENTINEL, b2, tpb2)
    x3 = _prep_section(fake_pred, -_SENTINEL, b3, tpb3)

    def _imap(start, nblocks):
        # Inactive sections clamp to a constant block index -> DMA elided by the pipeliner.
        def imap(i):
            return (jnp.clip(i - start, 0, nblocks - 1), 0, 0)
        return imap

    kernel = functools.partial(_gan_loss_kernel, b1=b1, b2=b2)

    bytes_in = (x1.size * x1.dtype.itemsize + x2.size * x2.dtype.itemsize
                + x3.size * x3.dtype.itemsize)
    cost = pl.CostEstimate(
        flops=8 * n_total,
        transcendentals=2 * n_total,
        bytes_accessed=int(bytes_in + num_blocks * _TILE_ELEMS * 4),
    )

    partials = pl.pallas_call(
        kernel,
        out_shape=jax.ShapeDtypeStruct((num_blocks, _SUBLANES, _LANES), jnp.float32),
        grid_spec=pltpu.PrefetchScalarGridSpec(
            num_scalar_prefetch=0,
            grid=(num_blocks,),
            in_specs=[
                pl.BlockSpec((tpb1, _SUBLANES, _LANES), _imap(0, b1)),
                pl.BlockSpec((tpb2, _SUBLANES, _LANES), _imap(b1, b2)),
                pl.BlockSpec((tpb3, _SUBLANES, _LANES), _imap(b1 + b2, b3)),
            ],
            out_specs=pl.BlockSpec((1, _SUBLANES, _LANES), lambda i: (i, 0, 0)),
        ),
        compiler_params=pltpu.CompilerParams(
            dimension_semantics=("parallel",)),      # distinct output slot per step
        cost_estimate=cost,
    )(x1, x2, x3)

    # Tiny final reduce outside the kernel; per-section mean applied once (more accurate
    # than per-element 1/n pre-weighting, and one fewer multiply per element).
    s1 = jnp.sum(partials[:b1])
    s2 = jnp.sum(partials[b1:b1 + b2])
    s3 = jnp.sum(partials[b1 + b2:])
    return loss_weight * (s1 / n1 + s2 / n2 + s3 / n3)


def _bce_ref(x, target):
    x = x.astype(jnp.float32)
    l = jnp.maximum(x, 0.0) - x * target + jnp.log1p(jnp.exp(-jnp.abs(x)))
    return jnp.mean(l)


if __name__ == "__main__":
    key = jax.random.PRNGKey(0)
    k1, k2, k3 = jax.random.split(key, 3)

    # NCHW discriminator logit maps (small synthetic shapes).
    real = jax.random.normal(k1, (2, 4, 16, 16), dtype=jnp.float32)
    fake_pred = jax.random.normal(k2, (2, 1, 8, 8), dtype=jnp.float32)
    real_pred = jax.random.normal(k3, (2, 1, 8, 8), dtype=jnp.float32)

    out = jax.jit(gan_loss)(real, fake_pred, real_pred)
    out = jax.block_until_ready(out)

    # Reference check (pure JAX) of the exact PyTorch semantics.
    ref = LOSS_WEIGHT * (_bce_ref(real, 1.0)
                         + _bce_ref(real_pred, 1.0)
                         + _bce_ref(fake_pred, 0.0))
    np.testing.assert_allclose(np.asarray(out), np.asarray(ref),
                               rtol=1e-5, atol=1e-5)

    print("KERNEL_OK")
</pallas_src>

<mosaic_0001>
module attributes {stable_mosaic.version = 11 : i64} {
  func.func @_gan_loss_kernel(%arg0: i32, %arg1: memref<2x8x128xf32, #tpu.memory_space<vmem>>, %arg2: memref<1x8x128xf32, #tpu.memory_space<vmem>>, %arg3: memref<1x8x128xf32, #tpu.memory_space<vmem>>, %arg4: memref<1x8x128xf32, #tpu.memory_space<vmem>>) attributes {dimension_semantics = [#tpu.dimension_semantics<parallel>], iteration_bounds = array<i64: 3>, scalar_prefetch = 0 : i64, scratch_operands = 0 : i64, tpu.core_type = #tpu.core_type<tc>, window_params = [{transform_indices = @transform_0, window_bounds = array<i64: 2, 8, 128>}, {transform_indices = @transform_1, window_bounds = array<i64: 1, 8, 128>}, {transform_indices = @transform_2, window_bounds = array<i64: 1, 8, 128>}, {transform_indices = @transform_3, window_bounds = array<i64: 1, 8, 128>}]} {
    %c1_i32 = arith.constant 1 : i32
    %0 = arith.cmpi slt, %arg0, %c1_i32 : i32
    %1 = arith.extui %0 : i1 to i32
    %c0_i32 = arith.constant 0 : i32
    %2 = arith.cmpi ne, %1, %c0_i32 : i32
    scf.if %2 {
      %c0 = arith.constant 0 : index
      %c0_4 = arith.constant 0 : index
      %c0_5 = arith.constant 0 : index
      %11 = vector.load %arg1[%c0, %c0_4, %c0_5] : memref<2x8x128xf32, #tpu.memory_space<vmem>>, vector<2x8x128xf32>
      %cst = arith.constant 0.000000e+00 : f32
      %12 = vector.broadcast %cst : f32 to vector<2x8x128xf32>
      %13 = arith.subf %12, %11 : vector<2x8x128xf32>
      %cst_6 = arith.constant 0.000000e+00 : f32
      %14 = vector.broadcast %cst_6 : f32 to vector<2x8x128xf32>
      %15 = arith.maximumf %13, %14 : vector<2x8x128xf32>
      %16 = math.absf %13 : vector<2x8x128xf32>
      %cst_7 = arith.constant 0.000000e+00 : f32
      %17 = vector.broadcast %cst_7 : f32 to vector<2x8x128xf32>
      %18 = arith.subf %17, %16 : vector<2x8x128xf32>
      %19 = math.exp %18 : vector<2x8x128xf32>
      %20 = math.log1p %19 : vector<2x8x128xf32>
      %21 = arith.addf %15, %20 : vector<2x8x128xf32>
      %cst_8 = arith.constant dense<0.000000e+00> : vector<8x128xf32>
      %22 = vector.multi_reduction <add>, %21, %cst_8 [0] : vector<2x8x128xf32> to vector<8x128xf32>
      %23 = vector.shape_cast %22 : vector<8x128xf32> to vector<1x8x128xf32>
      %c0_9 = arith.constant 0 : index
      %c0_10 = arith.constant 0 : index
      %c0_11 = arith.constant 0 : index
      %24 = vector.load %arg4[%c0_9, %c0_10, %c0_11] : memref<1x8x128xf32, #tpu.memory_space<vmem>>, vector<1x8x128xf32>
      tpu.vector_store %arg4[%c0_9, %c0_10, %c0_11], %23 {strides = array<i32>} : memref<1x8x128xf32, #tpu.memory_space<vmem>>, vector<1x8x128xf32>,
    } else {
    }
    %c1_i32_0 = arith.constant 1 : i32
    %3 = arith.cmpi sge, %arg0, %c1_i32_0 : i32
    %c2_i32 = arith.constant 2 : i32
    %4 = arith.cmpi slt, %arg0, %c2_i32 : i32
    %5 = arith.andi %3, %4 : i1
    %6 = arith.extui %5 : i1 to i32
    %c0_i32_1 = arith.constant 0 : i32
    %7 = arith.cmpi ne, %6, %c0_i32_1 : i32
    scf.if %7 {
      %c0 = arith.constant 0 : index
      %c0_4 = arith.constant 0 : index
      %c0_5 = arith.constant 0 : index
      %11 = vector.load %arg2[%c0, %c0_4, %c0_5] : memref<1x8x128xf32, #tpu.memory_space<vmem>>, vector<1x8x128xf32>
      %cst = arith.constant 0.000000e+00 : f32
      %12 = vector.broadcast %cst : f32 to vector<1x8x128xf32>
      %13 = arith.subf %12, %11 : vector<1x8x128xf32>
      %cst_6 = arith.constant 0.000000e+00 : f32
      %14 = vector.broadcast %cst_6 : f32 to vector<1x8x128xf32>
      %15 = arith.maximumf %13, %14 : vector<1x8x128xf32>
      %16 = math.absf %13 : vector<1x8x128xf32>
      %cst_7 = arith.constant 0.000000e+00 : f32
      %17 = vector.broadcast %cst_7 : f32 to vector<1x8x128xf32>
      %18 = arith.subf %17, %16 : vector<1x8x128xf32>
      %19 = math.exp %18 : vector<1x8x128xf32>
      %20 = math.log1p %19 : vector<1x8x128xf32>
      %21 = arith.addf %15, %20 : vector<1x8x128xf32>
      %cst_8 = arith.constant dense<0.000000e+00> : vector<8x128xf32>
      %22 = vector.multi_reduction <add>, %21, %cst_8 [0] : vector<1x8x128xf32> to vector<8x128xf32>
      %23 = vector.shape_cast %22 : vector<8x128xf32> to vector<1x8x128xf32>
      %c0_9 = arith.constant 0 : index
      %c0_10 = arith.constant 0 : index
      %c0_11 = arith.constant 0 : index
      %24 = vector.load %arg4[%c0_9, %c0_10, %c0_11] : memref<1x8x128xf32, #tpu.memory_space<vmem>>, vector<1x8x128xf32>
      tpu.vector_store %arg4[%c0_9, %c0_10, %c0_11], %23 {strides = array<i32>} : memref<1x8x128xf32, #tpu.memory_space<vmem>>, vector<1x8x128xf32>,
    } else {
    }
    %c2_i32_2 = arith.constant 2 : i32
    %8 = arith.cmpi sge, %arg0, %c2_i32_2 : i32
    %9 = arith.extui %8 : i1 to i32
    %c0_i32_3 = arith.constant 0 : i32
    %10 = arith.cmpi ne, %9, %c0_i32_3 : i32
    scf.if %10 {
      %c0 = arith.constant 0 : index
      %c0_4 = arith.constant 0 : index
      %c0_5 = arith.constant 0 : index
      %11 = vector.load %arg3[%c0, %c0_4, %c0_5] : memref<1x8x128xf32, #tpu.memory_space<vmem>>, vector<1x8x128xf32>
      %cst = arith.constant 0.000000e+00 : f32
      %12 = vector.broadcast %cst : f32 to vector<1x8x128xf32>
      %13 = arith.maximumf %11, %12 : vector<1x8x128xf32>
      %14 = math.absf %11 : vector<1x8x128xf32>
      %cst_6 = arith.constant 0.000000e+00 : f32
      %15 = vector.broadcast %cst_6 : f32 to vector<1x8x128xf32>
      %16 = arith.subf %15, %14 : vector<1x8x128xf32>
      %17 = math.exp %16 : vector<1x8x128xf32>
      %18 = math.log1p %17 : vector<1x8x128xf32>
      %19 = arith.addf %13, %18 : vector<1x8x128xf32>
      %cst_7 = arith.constant dense<0.000000e+00> : vector<8x128xf32>
      %20 = vector.multi_reduction <add>, %19, %cst_7 [0] : vector<1x8x128xf32> to vector<8x128xf32>
      %21 = vector.shape_cast %20 : vector<8x128xf32> to vector<1x8x128xf32>
      %c0_8 = arith.constant 0 : index
      %c0_9 = arith.constant 0 : index
      %c0_10 = arith.constant 0 : index
      %22 = vector.load %arg4[%c0_8, %c0_9, %c0_10] : memref<1x8x128xf32, #tpu.memory_space<vmem>>, vector<1x8x128xf32>
      tpu.vector_store %arg4[%c0_8, %c0_9, %c0_10], %21 {strides = array<i32>} : memref<1x8x128xf32, #tpu.memory_space<vmem>>, vector<1x8x128xf32>,
    } else {
    }
    return
  }
  func.func @transform_0(%arg0: i32) -> (i32, i32, i32) {
    %c0_i32 = arith.constant 0 : i32
    %0 = arith.subi %arg0, %c0_i32 : i32
    %c0_i32_0 = arith.constant 0 : i32
    %c0_i32_1 = arith.constant 0 : i32
    %1 = arith.maxsi %c0_i32_0, %0 : i32
    %2 = arith.minsi %c0_i32_1, %1 : i32
    %c0_i32_2 = arith.constant 0 : i32
    %c0_i32_3 = arith.constant 0 : i32
    %c0_i32_4 = arith.constant 0 : i32
    return %2, %c0_i32_2, %c0_i32_3 : i32, i32, i32
  }
  func.func @transform_1(%arg0: i32) -> (i32, i32, i32) {
    %c1_i32 = arith.constant 1 : i32
    %0 = arith.subi %arg0, %c1_i32 : i32
    %c0_i32 = arith.constant 0 : i32
    %c0_i32_0 = arith.constant 0 : i32
    %1 = arith.maxsi %c0_i32, %0 : i32
    %2 = arith.minsi %c0_i32_0, %1 : i32
    %c0_i32_1 = arith.constant 0 : i32
    %c0_i32_2 = arith.constant 0 : i32
    %c0_i32_3 = arith.constant 0 : i32
    return %2, %c0_i32_1, %c0_i32_2 : i32, i32, i32
  }
  func.func @transform_2(%arg0: i32) -> (i32, i32, i32) {
    %c2_i32 = arith.constant 2 : i32
    %0 = arith.subi %arg0, %c2_i32 : i32
    %c0_i32 = arith.constant 0 : i32
    %c0_i32_0 = arith.constant 0 : i32
    %1 = arith.maxsi %c0_i32, %0 : i32
    %2 = arith.minsi %c0_i32_0, %1 : i32
    %c0_i32_1 = arith.constant 0 : i32
    %c0_i32_2 = arith.constant 0 : i32
    %c0_i32_3 = arith.constant 0 : i32
    return %2, %c0_i32_1, %c0_i32_2 : i32, i32, i32
  }
  func.func @transform_3(%arg0: i32) -> (i32, i32, i32) {
    %c0_i32 = arith.constant 0 : i32
    %c0_i32_0 = arith.constant 0 : i32
    %c0_i32_1 = arith.constant 0 : i32
    return %arg0, %c0_i32, %c0_i32_0 : i32, i32, i32
  }
}

</mosaic_0001>

<llo_original>
// kernel: gan_loss.1
$region0: #{gan_loss.1}
  #allocation0 [shape = 'u32[]', space=smem, size = 0x4, offset = 0x4, fixed_abs, tag = 'smem constant byte address 0x4 - core index']
  #allocation1 [shape = 'u32[72,128]{1,0:T(1,128)}', space=vmem, size = 0x9000, scoped, tag = 'internal scratch']
  %s0 = inlined_call_operand.vmem [shape: f32[2,8,128], index: 0, kind: input, shape index: {}]
  %s1 = inlined_call_operand.vmem [shape: f32[1,8,128], index: 1, kind: input, shape index: {}]
  %s2 = inlined_call_operand.vmem [shape: f32[1,8,128], index: 2, kind: input, shape index: {}]
  %s3 = inlined_call_operand.vmem [shape: f32[3,8,128], index: 3, kind: output, shape index: {}]
  %s4 = sld [smem:[#allocation0]]
  $region57: #{gan_loss.1} parent=0
    _
  %s6 = ssub.s32 1, %s4
  %s7 = scalar_select 0, %s6, %s4
  loop: start=0, step=1, limit=5
  $region2: #{gan_loss.1} parent=0 // loop_pre_header
    _
  $region3: #{gan_loss.1} parent=0 // loop_header
    %s9 = sphi 0, %s13
    %p10 = scmp.ge.s32.totalorder %s9, 5
    %s27 = sphi 0, %s29
    %s30 = sphi 0, %s27
    %s31 = sphi 0, %s30
    %s47 = sphi 0, %s31
    %s63 = sphi 0, %s65
    %s66 = sphi 0, %s63
    %s67 = sphi 0, %s66
    %s83 = sphi 0, %s67
    %s99 = sphi 0, %s101
    %s102 = sphi 0, %s99
    %s103 = sphi 0, %s102
    %s119 = sphi 0, %s103
    %s125 = sphi 0, %s127
    %s128 = sphi 0, %s125
    %s129 = sphi 0, %s128
    %s145 = sphi 0, %s129
  $region4: #{gan_loss.1} parent=0 // loop_header_branch
    %12 = sbr.rel (%p10) target = $region8
  $region5: #{gan_loss.1} parent=0 // loop_body
    %s14 = ssub.s32 %s9, 1
    %s15 = ssub.s32 %s9, 2
    %s16 = sadd.s32 %s9, 1
    %p17 = scmp.gt.s32.totalorder %s9, 0
    %s18 = scalar_select %p17, %s9, 0
    %p19 = scmp.lt.s32.totalorder %s18, 0
    %s20 = scalar_select %p19, %s18, 0
    %p21 = scmp.gt.s32.totalorder %s16, 0
    %s22 = scalar_select %p21, %s16, 0
    %p23 = scmp.lt.s32.totalorder %s22, 0
    %s24 = scalar_select %p23, %s22, 0
    %s25 = ssub.s32 %s20, %s24
    %p26 = scmp.eq.s32.totalorder %s25, 0
    %s28 = sadd.s32 %s27, 1
    %s29 = scalar_select %p26, %s27, %s28
    %p32 = pneg %p26
    %p33 = scmp.eq.s32.totalorder %s9, 2
    %p34 = por %p32, %p33
    %p35 = scmp.ne.s32.totalorder %s27, %s30
    %p36 = scmp.eq.s32.totalorder %s9, 0
    %p37 = por %p35, %p36
    %p38 = scmp.ne.s32.totalorder %s27, %s30
    %p39 = scmp.eq.s32.totalorder %s14, 2
    %p40 = por %p38, %p39
    %p41 = scmp.ne.s32.totalorder %s30, %s31
    %p42 = scmp.eq.s32.totalorder %s14, 0
    %p43 = por %p41, %p42
    %p44 = scmp.ne.s32.totalorder %s30, %s31
    %p45 = scmp.eq.s32.totalorder %s15, 2
    %p46 = por %p44, %p45
    %p48 = scmp.ne.s32.totalorder %s31, %s47
    %p49 = scmp.eq.s32.totalorder %s15, 0
    %p50 = por %p48, %p49
    %s51 = ssub.s32 %s9, 1
    %p52 = scmp.gt.s32.totalorder %s51, 0
    %s53 = scalar_select %p52, %s51, 0
    %p54 = scmp.lt.s32.totalorder %s53, 0
    %s55 = scalar_select %p54, %s53, 0
    %s56 = ssub.s32 %s16, 1
    %p57 = scmp.gt.s32.totalorder %s56, 0
    %s58 = scalar_select %p57, %s56, 0
    %p59 = scmp.lt.s32.totalorder %s58, 0
    %s60 = scalar_select %p59, %s58, 0
    %s61 = ssub.s32 %s55, %s60
    %p62 = scmp.eq.s32.totalorder %s61, 0
    %s64 = sadd.s32 %s63, 1
    %s65 = scalar_select %p62, %s63, %s64
    %p68 = pneg %p62
    %p69 = scmp.eq.s32.totalorder %s9, 2
    %p70 = por %p68, %p69
    %p71 = scmp.ne.s32.totalorder %s63, %s66
    %p72 = scmp.eq.s32.totalorder %s9, 0
    %p73 = por %p71, %p72
    %p74 = scmp.ne.s32.totalorder %s63, %s66
    %p75 = scmp.eq.s32.totalorder %s14, 2
    %p76 = por %p74, %p75
    %p77 = scmp.ne.s32.totalorder %s66, %s67
    %p78 = scmp.eq.s32.totalorder %s14, 0
    %p79 = por %p77, %p78
    %p80 = scmp.ne.s32.totalorder %s66, %s67
    %p81 = scmp.eq.s32.totalorder %s15, 2
    %p82 = por %p80, %p81
    %p84 = scmp.ne.s32.totalorder %s67, %s83
    %p85 = scmp.eq.s32.totalorder %s15, 0
    %p86 = por %p84, %p85
    %s87 = ssub.s32 %s9, 2
    %p88 = scmp.gt.s32.totalorder %s87, 0
    %s89 = scalar_select %p88, %s87, 0
    %p90 = scmp.lt.s32.totalorder %s89, 0
    %s91 = scalar_select %p90, %s89, 0
    %s92 = ssub.s32 %s16, 2
    %p93 = scmp.gt.s32.totalorder %s92, 0
    %s94 = scalar_select %p93, %s92, 0
    %p95 = scmp.lt.s32.totalorder %s94, 0
    %s96 = scalar_select %p95, %s94, 0
    %s97 = ssub.s32 %s91, %s96
    %p98 = scmp.eq.s32.totalorder %s97, 0
    %s100 = sadd.s32 %s99, 1
    %s101 = scalar_select %p98, %s99, %s100
    %p104 = pneg %p98
    %p105 = scmp.eq.s32.totalorder %s9, 2
    %p106 = por %p104, %p105
    %p107 = scmp.ne.s32.totalorder %s99, %s102
    %p108 = scmp.eq.s32.totalorder %s9, 0
    %p109 = por %p107, %p108
    %p110 = scmp.ne.s32.totalorder %s99, %s102
    %p111 = scmp.eq.s32.totalorder %s14, 2
    %p112 = por %p110, %p111
    %p113 = scmp.ne.s32.totalorder %s102, %s103
    %p114 = scmp.eq.s32.totalorder %s14, 0
    %p115 = por %p113, %p114
    %p116 = scmp.ne.s32.totalorder %s102, %s103
    %p117 = scmp.eq.s32.totalorder %s15, 2
    %p118 = por %p116, %p117
    %p120 = scmp.ne.s32.totalorder %s103, %s119
    %p121 = scmp.eq.s32.totalorder %s15, 0
    %p122 = por %p120, %p121
    %s123 = ssub.s32 %s9, %s16
    %p124 = scmp.eq.s32.totalorder %s123, 0
    %s126 = sadd.s32 %s125, 1
    %s127 = scalar_select %p124, %s125, %s126
    %p130 = pneg %p124
    %p131 = scmp.eq.s32.totalorder %s9, 2
    %p132 = por %p130, %p131
    %p133 = scmp.ne.s32.totalorder %s125, %s128
    %p134 = scmp.eq.s32.totalorder %s9, 0
    %p135 = por %p133, %p134
    %p136 = scmp.ne.s32.totalorder %s125, %s128
    %p137 = scmp.eq.s32.totalorder %s14, 2
    %p138 = por %p136, %p137
    %p139 = scmp.ne.s32.totalorder %s128, %s129
    %p140 = scmp.eq.s32.totalorder %s14, 0
    %p141 = por %p139, %p140
    %p142 = scmp.ne.s32.totalorder %s128, %s129
    %p143 = scmp.eq.s32.totalorder %s15, 2
    %p144 = por %p142, %p143
    %p146 = scmp.ne.s32.totalorder %s129, %s145
    %p147 = scmp.eq.s32.totalorder %s15, 0
    %p148 = por %p146, %p147
    %p149 = scmp.le.s32.totalorder 1, %s9
    %p150 = scmp.lt.s32.totalorder %s9, 4
    %p151 = pnand %p149, %p150
    %p152 = pneg %p151
    // Predicated region
    $region9: #{gan_loss.1} parent=5 // pred_check
      _
    $region10: #{gan_loss.1} parent=5 // pred_check_branch
      %154 = sbr.rel (%p151) target = $region12
    $region11: #{gan_loss.1} parent=5 // pred_region
      %s155 = ssub.s32 %s9, 1
    $region12: #{gan_loss.1} parent=5 // pred_fallthru
      _
    %p156 = scmp.lt.s32.totalorder %s9, 3
    // Predicated region
    $region13: #{gan_loss.1} parent=5 // pred_check
      %p157 = pneg %p156
    $region14: #{gan_loss.1} parent=5 // pred_check_branch
      %159 = sbr.rel (%p157) target = $region16
    $region15: #{gan_loss.1} parent=5 // pred_region
      // Predicated region
      $region17: #{gan_loss.1} parent=15 // pred_check
        %p160 = pneg %p37
      $region18: #{gan_loss.1} parent=15 // pred_check_branch
        %162 = sbr.rel (%p160) target = $region20
      $region19: #{gan_loss.1} parent=15 // pred_region
        %p163 = scmp.gt.s32.totalorder %s9, 0
        %s164 = scalar_select %p163, %s9, 0
        %p165 = scmp.lt.s32.totalorder %s164, 0
        %s166 = scalar_select %p165, %s164, 0
        %s167 = smul.u32 2, %s166
        %p168 = scmp.lt.s32.totalorder %s167, 1
        %s169 = scalar_select %p168, %s167, 1
        %s170 = smul.addr %s169, 8
        %s171 = scalar_lea.vmem %s0, %s170
        %p172 = scmp.gt.s32.totalorder %s9, 0
        %s173 = scalar_select %p172, %s9, 0
        %p174 = scmp.lt.s32.totalorder %s173, 0
        %s175 = scalar_select %p174, %s173, 0
        %s176 = smul.u32 2, %s175
      $region20: #{gan_loss.1} parent=15 // pred_fallthru
        _
      // Predicated region
      $region21: #{gan_loss.1} parent=15 // pred_check
        %p177 = pneg %p73
      $region22: #{gan_loss.1} parent=15 // pred_check_branch
        %179 = sbr.rel (%p177) target = $region24
      $region23: #{gan_loss.1} parent=15 // pred_region
        %s180 = ssub.s32 %s9, 1
        %p181 = scmp.gt.s32.totalorder %s180, 0
        %s182 = scalar_select %p181, %s180, 0
        %p183 = scmp.lt.s32.totalorder %s182, 0
        %s184 = scalar_select %p183, %s182, 0
        %p185 = scmp.lt.s32.totalorder %s184, 0
        %s186 = scalar_select %p185, %s184, 0
        %s187 = smul.addr %s186, 8
        %s188 = scalar_lea.vmem %s1, %s187
        %s189 = ssub.s32 %s9, 1
        %p190 = scmp.gt.s32.totalorder %s189, 0
        %s191 = scalar_select %p190, %s189, 0
        %p192 = scmp.lt.s32.totalorder %s191, 0
        %s193 = scalar_select %p192, %s191, 0
      $region24: #{gan_loss.1} parent=15 // pred_fallthru
        _
      // Predicated region
      $region25: #{gan_loss.1} parent=15 // pred_check
        %p194 = pneg %p109
      $region26: #{gan_loss.1} parent=15 // pred_check_branch
        %196 = sbr.rel (%p194) target = $region28
      $region27: #{gan_loss.1} parent=15 // pred_region
        %s197 = ssub.s32 %s9, 2
        %p198 = scmp.gt.s32.totalorder %s197, 0
        %s199 = scalar_select %p198, %s197, 0
        %p200 = scmp.lt.s32.totalorder %s199, 0
        %s201 = scalar_select %p200, %s199, 0
        %p202 = scmp.lt.s32.totalorder %s201, 0
        %s203 = scalar_select %p202, %s201, 0
        %s204 = smul.addr %s203, 8
        %s205 = scalar_lea.vmem %s2, %s204
        %s206 = ssub.s32 %s9, 2
        %p207 = scmp.gt.s32.totalorder %s206, 0
        %s208 = scalar_select %p207, %s206, 0
        %p209 = scmp.lt.s32.totalorder %s208, 0
        %s210 = scalar_select %p209, %s208, 0
      $region28: #{gan_loss.1} parent=15 // pred_fallthru
        _
    $region16: #{gan_loss.1} parent=5 // pred_fallthru
      _
    %p211 = scmp.le.s32.totalorder 1, %s9
    %p212 = scmp.lt.s32.totalorder %s9, 4
    %p213 = pnand %p211, %p212
    %p214 = pneg %p213
    // Predicated region
    $region29: #{gan_loss.1} parent=5 // pred_check
      _
    $region30: #{gan_loss.1} parent=5 // pred_check_branch
      %216 = sbr.rel (%p213) target = $region32
    $region31: #{gan_loss.1} parent=5 // pred_region
      %s217 = ssub.s32 %s9, 1
      %p218 = scmp.gt.s32.totalorder %s14, 0
      %s219 = scalar_select %p218, %s14, 0
      %p220 = scmp.lt.s32.totalorder %s219, 0
      %s221 = scalar_select %p220, %s219, 0
      %s222 = smul.u32 2, %s221
      %p223 = scmp.lt.s32.totalorder %s222, 1
      %s224 = scalar_select %p223, %s222, 1
      %s225 = smul.addr %s224, 8
      %s226 = scalar_lea.vmem %s0, %s225
      %p227 = pneg %p43
      %p228 = pneg %p40
      %s229 = ssub.s32 %s14, 1
      %p230 = scmp.gt.s32.totalorder %s229, 0
      %s231 = scalar_select %p230, %s229, 0
      %p232 = scmp.lt.s32.totalorder %s231, 0
      %s233 = scalar_select %p232, %s231, 0
      %p234 = scmp.lt.s32.totalorder %s233, 0
      %s235 = scalar_select %p234, %s233, 0
      %s236 = smul.addr %s235, 8
      %s237 = scalar_lea.vmem %s1, %s236
      %p238 = pneg %p79
      %p239 = pneg %p76
      %s240 = ssub.s32 %s14, 2
      %p241 = scmp.gt.s32.totalorder %s240, 0
      %s242 = scalar_select %p241, %s240, 0
      %p243 = scmp.lt.s32.totalorder %s242, 0
      %s244 = scalar_select %p243, %s242, 0
      %p245 = scmp.lt.s32.totalorder %s244, 0
      %s246 = scalar_select %p245, %s244, 0
      %s247 = smul.addr %s246, 8
      %s248 = scalar_lea.vmem %s2, %s247
      %p249 = pneg %p115
      %p250 = pneg %p112
      %p251 = pneg %p141
      %p252 = pneg %p138
      %p253 = scmp.lt.s32.totalorder %s14, 2
      %s254 = scalar_select %p253, %s14, 2
      %s255 = smul.addr %s254, 8
      %s256 = scalar_lea.vmem %s3, %s255
      %p257 = scmp.gt.s32.totalorder %s14, 0
      %s258 = scalar_select %p257, %s14, 0
      %p259 = scmp.lt.s32.totalorder %s258, 0
      %s260 = scalar_select %p259, %s258, 0
      %s261 = smul.u32 2, %s260
      %p262 = scmp.lt.s32.totalorder %s261, 1
      %s263 = scalar_select %p262, %s261, 1
      %s264 = smul.addr %s263, 8
      %s265 = scalar_lea.vmem %s0, %s264
      %p266 = scmp.gt.s32.totalorder %s14, 0
      %s267 = scalar_select %p266, %s14, 0
      %p268 = scmp.lt.s32.totalorder %s267, 0
      %s269 = scalar_select %p268, %s267, 0
      %s270 = smul.u32 2, %s269
      %s271 = ssub.s32 %s14, 1
      %p272 = scmp.gt.s32.totalorder %s271, 0
      %s273 = scalar_select %p272, %s271, 0
      %p274 = scmp.lt.s32.totalorder %s273, 0
      %s275 = scalar_select %p274, %s273, 0
      %p276 = scmp.lt.s32.totalorder %s275, 0
      %s277 = scalar_select %p276, %s275, 0
      %s278 = smul.addr %s277, 8
      %s279 = scalar_lea.vmem %s1, %s278
      %s280 = ssub.s32 %s14, 1
      %p281 = scmp.gt.s32.totalorder %s280, 0
      %s282 = scalar_select %p281, %s280, 0
      %p283 = scmp.lt.s32.totalorder %s282, 0
      %s284 = scalar_select %p283, %s282, 0
      %s285 = ssub.s32 %s14, 2
      %p286 = scmp.gt.s32.totalorder %s285, 0
      %s287 = scalar_select %p286, %s285, 0
      %p288 = scmp.lt.s32.totalorder %s287, 0
      %s289 = scalar_select %p288, %s287, 0
      %p290 = scmp.lt.s32.totalorder %s289, 0
      %s291 = scalar_select %p290, %s289, 0
      %s292 = smul.addr %s291, 8
      %s293 = scalar_lea.vmem %s2, %s292
      %s294 = ssub.s32 %s14, 2
      %p295 = scmp.gt.s32.totalorder %s294, 0
      %s296 = scalar_select %p295, %s294, 0
      %p297 = scmp.lt.s32.totalorder %s296, 0
      %s298 = scalar_select %p297, %s296, 0
      %p299 = scmp.lt.s32.totalorder %s14, 2
      %s300 = scalar_select %p299, %s14, 2
      %s301 = smul.addr %s300, 8
      %s302 = scalar_lea.vmem %s3, %s301
      %p303 = scmp.lt.s32.totalorder %s14, 1
      // Predicated region
      $region33: #{gan_loss.1} parent=31 // pred_check
        %p304 = pneg %p303
      $region34: #{gan_loss.1} parent=31 // pred_check_branch
        %306 = sbr.rel (%p304) target = $region36
      $region35: #{gan_loss.1} parent=31 // pred_region
        %v307 = vld [vmem:[%s265] sm:$0xff]
        %v308 = vld [vmem:[%s265 + $0x8] sm:$0xff]
        %v309 = vsub.f32 0.0, %v307
        %v310 = vsub.f32 0.0, %v308
        %v311 = vmax.f32 %v309, 0.0
        %v312 = vmax.f32 %v310, 0.0
        %v313 = vand.u32 2147483647, %v309
        %v314 = vand.u32 2147483647, %v310
        %v315 = vsub.f32 0.0, %v313
        %v316 = vsub.f32 0.0, %v314
        %v317 = vmul.f32 %v315, 1.442695
        %v318 = vpow.pop %v317
        %v319 = vmul.f32 %v316, 1.442695
        %v320 = vpow.pop %v319
        %v321 = vadd.f32 %v318, 1.0
        %v322 = vlog2.pop %v321
        %v323 = vmul.f32 %v322, 0.6931472
        %v324 = vmul.f32 -0.5, %v318
        %v325 = vadd.f32 %v324, 1.0
        %v326 = vmul.f32 %v325, %v318
        %v327 = vand.u32 2147483647, %v318
        %vm328 = vcmp.lt.f32.partialorder %v327, 0.0004427343
        %v329 = vsel %vm328, %v326, %v323
        %v330 = vadd.f32 %v320, 1.0
        %v331 = vlog2.pop %v330
        %v332 = vmul.f32 %v331, 0.6931472
        %v333 = vmul.f32 -0.5, %v320
        %v334 = vadd.f32 %v333, 1.0
        %v335 = vmul.f32 %v334, %v320
        %v336 = vand.u32 2147483647, %v320
        %vm337 = vcmp.lt.f32.partialorder %v336, 0.0004427343
        %v338 = vsel %vm337, %v335, %v332
        %v339 = vadd.f32 %v311, %v329
        %v340 = vadd.f32 %v312, %v338
        %v341 = vadd.f32 %v339, %v340
        %342 = vst [vmem:[%s302] sm:$0xff] %v341
      $region36: #{gan_loss.1} parent=31 // pred_fallthru
        _
      %p343 = scmp.ge.s32.totalorder %s14, 1
      %p344 = scmp.lt.s32.totalorder %s14, 2
      %p345 = pnand %p343, %p344
      %p346 = pneg %p345
      // Predicated region
      $region37: #{gan_loss.1} parent=31 // pred_check
        _
      $region38: #{gan_loss.1} parent=31 // pred_check_branch
        %348 = sbr.rel (%p345) target = $region40
      $region39: #{gan_loss.1} parent=31 // pred_region
        %v349 = vld [vmem:[%s279] sm:$0xff]
        %v350 = vsub.f32 0.0, %v349
        %v351 = vmax.f32 %v350, 0.0
        %v352 = vand.u32 2147483647, %v350
        %v353 = vsub.f32 0.0, %v352
        %v354 = vmul.f32 %v353, 1.442695
        %v355 = vpow.pop %v354
        %v356 = vadd.f32 %v355, 1.0
        %v357 = vlog2.pop %v356
        %v358 = vmul.f32 %v357, 0.6931472
        %v359 = vmul.f32 -0.5, %v355
        %v360 = vadd.f32 %v359, 1.0
        %v361 = vmul.f32 %v360, %v355
        %v362 = vand.u32 2147483647, %v355
        %vm363 = vcmp.lt.f32.partialorder %v362, 0.0004427343
        %v364 = vsel %vm363, %v361, %v358
        %v365 = vadd.f32 %v351, %v364
        %v366 = vadd.f32 %v365, 0.0
        %367 = vst [vmem:[%s302] sm:$0xff] %v366
      $region40: #{gan_loss.1} parent=31 // pred_fallthru
        _
      %p368 = scmp.ge.s32.totalorder %s14, 2
      // Predicated region
      $region41: #{gan_loss.1} parent=31 // pred_check
        %p369 = pneg %p368
      $region42: #{gan_loss.1} parent=31 // pred_check_branch
        %371 = sbr.rel (%p369) target = $region44
      $region43: #{gan_loss.1} parent=31 // pred_region
        %v372 = vld [vmem:[%s293] sm:$0xff]
        %v373 = vmax.f32 %v372, 0.0
        %v374 = vand.u32 2147483647, %v372
        %v375 = vsub.f32 0.0, %v374
        %v376 = vmul.f32 %v375, 1.442695
        %v377 = vpow.pop %v376
        %v378 = vadd.f32 %v377, 1.0
        %v379 = vlog2.pop %v378
        %v380 = vmul.f32 %v379, 0.6931472
        %v381 = vmul.f32 -0.5, %v377
        %v382 = vadd.f32 %v381, 1.0
        %v383 = vmul.f32 %v382, %v377
        %v384 = vand.u32 2147483647, %v377
        %vm385 = vcmp.lt.f32.partialorder %v384, 0.0004427343
        %v386 = vsel %vm385, %v383, %v380
        %v387 = vadd.f32 %v373, %v386
        %v388 = vadd.f32 %v387, 0.0
        %389 = vst [vmem:[%s302] sm:$0xff] %v388
      $region44: #{gan_loss.1} parent=31 // pred_fallthru
        _
      %p390 = scmp.lt.s32.totalorder %s14, 2
      %s391 = scalar_select %p390, %s14, 2
      %s392 = smul.addr %s391, 8
      %s393 = scalar_lea.vmem %s3, %s392
      // Predicated region
      $region45: #{gan_loss.1} parent=31 // pred_check
        %p394 = pneg %p138
      $region46: #{gan_loss.1} parent=31 // pred_check_branch
        %396 = sbr.rel (%p394) target = $region48
      $region47: #{gan_loss.1} parent=31 // pred_region
        _
      $region48: #{gan_loss.1} parent=31 // pred_fallthru
        _
    $region32: #{gan_loss.1} parent=5 // pred_fallthru
      _
    %p397 = scmp.le.s32.totalorder 2, %s9
    // Predicated region
    $region49: #{gan_loss.1} parent=5 // pred_check
      %p398 = pneg %p397
    $region50: #{gan_loss.1} parent=5 // pred_check_branch
      %400 = sbr.rel (%p398) target = $region52
    $region51: #{gan_loss.1} parent=5 // pred_region
      %s401 = ssub.s32 %s9, 2
      // Predicated region
      $region53: #{gan_loss.1} parent=51 // pred_check
        %p402 = pneg %p144
      $region54: #{gan_loss.1} parent=51 // pred_check_branch
        %404 = sbr.rel (%p402) target = $region56
      $region55: #{gan_loss.1} parent=51 // pred_region
        %p405 = scmp.lt.s32.totalorder %s15, 2
        %s406 = scalar_select %p405, %s15, 2
        %s407 = smul.addr %s406, 8
        %s408 = scalar_lea.vmem %s3, %s407
      $region56: #{gan_loss.1} parent=51 // pred_fallthru
        _
    $region52: #{gan_loss.1} parent=5 // pred_fallthru
      _
  $region6: #{gan_loss.1} parent=0 // loop_footer
    %s13 = sadd.s32 1, %s9
  $region7: #{gan_loss.1} parent=0 // loop_footer_branch
    %8 = sbr.rel target = $region3
  $region8: #{gan_loss.1} parent=0 // loop_exit
    _

</llo_original>
